<compile_context>
chip_gen: v7x
topology: tpu7x:2x2x1
jax: 0.10.0
libtpu: 0.0.40
codegen_flags: <defaults>
</compile_context>

<pallas_src>
import functools

import jax
import jax.numpy as jnp
from jax.experimental import pallas as pl
from jax.experimental.pallas import tpu as pltpu


def _channel_attention_kernel(x_ref, w1_ref, w2_ref, o_ref,
                              sum_ref, max_ref, *, hw, hw_tile, inv_hw):
    # x_ref  : (1, C, hw_tile)  native dtype   (current HW chunk of one image)
    # w1_ref : (Ch, C) float32  (fc1 weight, PyTorch layout)
    # w2_ref : (C, Ch) float32  (fc2 weight, PyTorch layout)
    # o_ref  : (1, C, 1) x.dtype
    # sum_ref, max_ref : (C, 1) float32 VMEM scratch (running pool accumulators)
    h = pl.program_id(1)
    last = pl.num_programs(1) - 1

    @pl.when(h == 0)
    def _init():
        sum_ref[...] = jnp.zeros_like(sum_ref)
        max_ref[...] = jnp.full_like(max_ref, -jnp.inf)

    x = x_ref[0].astype(jnp.float32)                 # (C, hw_tile), f32 accum

    def _accumulate(xs, xm):
        sum_ref[...] += jnp.sum(xs, axis=-1, keepdims=True)          # (C, 1)
        max_ref[...] = jnp.maximum(max_ref[...],
                                   jnp.max(xm, axis=-1, keepdims=True))

    if hw % hw_tile != 0:
        # Ragged spatial extent: only the LAST chunk needs masking; all full
        # chunks take the cheap unmasked path (gated with pl.when).
        @pl.when(h < last)
        def _full_chunk():
            _accumulate(x, x)

        @pl.when(h == last)
        def _tail_chunk():
            # Lane-only iota; broadcast over C (sublanes) in the selects.
            lane = jax.lax.broadcasted_iota(jnp.int32, (1, hw_tile), 1)
            valid = lane < (hw - h * hw_tile)
            _accumulate(jnp.where(valid, x, 0.0),
                        jnp.where(valid, x, -jnp.inf))
    else:
        _accumulate(x, x)

    @pl.when(h == last)
    def _epilogue():
        avg = sum_ref[...] * inv_hw                                  # (C, 1)
        mx = max_ref[...]                                            # (C, 1)
        # Fused MLP on the stacked (avg, max) operand, kept in (C, 2) layout
        # so no accumulator relayout is needed: hid = relu(W1 @ p), y = W2 @ hid.
        p = jnp.concatenate([avg, mx], axis=1)                       # (C, 2)
        hid = jnp.maximum(
            jnp.dot(w1_ref[...], p, preferred_element_type=jnp.float32), 0.0)
        y = jnp.dot(w2_ref[...], hid, preferred_element_type=jnp.float32)
        out = y[:, 0:1] + y[:, 1:2]                                  # (C, 1)
        o_ref[...] = jax.nn.sigmoid(out).reshape(o_ref.shape).astype(o_ref.dtype)


def _physical_vmem_bytes():
    """Physical VMEM per TensorCore; conservative fallback is v7x (64 MiB)."""
    try:
        info = pltpu.get_tpu_info()
        vb = getattr(info, "vmem_capacity_bytes", None)
        if vb:
            return int(vb)
    except Exception:
        pass
    return 64 * 1024 * 1024


def _choose_hw_tile(hw, c, itemsize, phys_vmem):
    """Largest multiple-of-128 HW tile with one buffer ~8 MiB (<= phys/6)."""
    target_bytes = min(8 * 1024 * 1024, phys_vmem // 6)
    tile = max(128, (target_bytes // max(1, c * itemsize)) // 128 * 128)
    return hw if hw <= tile else tile


def channel_attention(x, w1, w2, *, hw_tile=None):
    """x: (N, C, H, W); w1: (C//16, C); w2: (C, C//16). Returns (N, C, 1, 1)."""
    N, C, H, W = x.shape
    HW = H * W
    Ch = w1.shape[0]
    itemsize = jnp.dtype(x.dtype).itemsize
    phys = _physical_vmem_bytes()

    # x keeps its native dtype (no f32 copy in HBM); weights are tiny -> f32,
    # kept in PyTorch layout (the epilogue MLP is written in transposed form).
    x_flat = x.reshape(N, C, HW)
    w1f = w1.astype(jnp.float32)        # (Ch, C)
    w2f = w2.astype(jnp.float32)        # (C, Ch)

    if hw_tile is None:
        hw_tile = _choose_hw_tile(HW, C, itemsize, phys)
    if hw_tile >= HW:
        hw_tile = HW                    # single full-extent chunk
    else:
        # Clamp manual overrides: multiple of 128 and >= ~1 KiB per DMA row.
        min_tile = -(-(1024 // itemsize) // 128) * 128
        hw_tile = max(min_tile, (hw_tile // 128) * 128)
        if hw_tile >= HW:
            hw_tile = HW
    num_hw = pl.cdiv(HW, hw_tile)

    # Explicit scoped-VMEM limit: covers 2x double-buffered x blocks + weights
    # with headroom, stays within 3/4 of physical VMEM (v7x = 64 MiB).
    block_bytes = C * hw_tile * itemsize
    weight_bytes = 4 * (int(w1f.size) + int(w2f.size))
    needed = 2 * block_bytes + 2 * weight_bytes + 8 * C + (2 << 20)
    vmem_limit = int(min(phys * 3 // 4, max(needed, 32 * 1024 * 1024)))

    kernel = functools.partial(
        _channel_attention_kernel,
        hw=HW, hw_tile=hw_tile, inv_hw=float(1.0 / HW))

    cost = pl.CostEstimate(
        flops=2 * N * C * HW + 8 * N * C * Ch,
        transcendentals=N * C,
        bytes_accessed=(N * C * HW * itemsize + weight_bytes
                        + N * C * itemsize),
    )

    out = pl.pallas_call(
        kernel,
        out_shape=jax.ShapeDtypeStruct((N, C, 1), x.dtype),
        grid=(N, num_hw),
        in_specs=[
            pl.BlockSpec((1, C, hw_tile), lambda n, h: (n, 0, h)),
            pl.BlockSpec((Ch, C), lambda n, h: (0, 0)),
            pl.BlockSpec((C, Ch), lambda n, h: (0, 0)),
        ],
        out_specs=pl.BlockSpec((1, C, 1), lambda n, h: (n, 0, 0)),
        scratch_shapes=[
            pltpu.VMEM((C, 1), jnp.float32),   # running sum  (C on sublanes)
            pltpu.VMEM((C, 1), jnp.float32),   # running max  (C on sublanes)
        ],
        compiler_params=pltpu.CompilerParams(
            dimension_semantics=("parallel", "arbitrary"),
            vmem_limit_bytes=vmem_limit),
        cost_estimate=cost,
    )(x_flat, w1f, w2f)

    return out.reshape(N, C, 1, 1)


def channel_attention_ref(x, w1, w2):
    """Pure-JAX reference mirroring the PyTorch forward."""
    avg = jnp.mean(x, axis=(2, 3))            # (N, C)
    mx = jnp.max(x, axis=(2, 3))              # (N, C)

    def mlp(p):
        h = jnp.maximum(p @ w1.T, 0.0)        # (N, Ch)
        return h @ w2.T                       # (N, C)

    out = jax.nn.sigmoid(mlp(avg) + mlp(mx))
    return out.reshape(x.shape[0], x.shape[1], 1, 1)


if __name__ == "__main__":
    key = jax.random.PRNGKey(0)
    k_x, k_w1, k_w2, k_x2 = jax.random.split(key, 4)

    N, C = 2, 32                     # C must be >= 16 since hidden = C // 16
    Ch = C // 16                     # hidden channels (= 2)

    # Deterministic synthetic weights (conv 1x1, no bias -> plain matrices).
    w1 = jax.random.normal(k_w1, (Ch, C), dtype=jnp.float32) * 0.1   # fc1.weight
    w2 = jax.random.normal(k_w2, (C, Ch), dtype=jnp.float32) * 0.1   # fc2.weight

    # Case 1: HW = 32*32 = 1024 with 256-wide chunks -> exercises multi-chunk
    # f32 accumulation across the "arbitrary" grid axis.
    x = jax.random.normal(k_x, (N, C, 32, 32), dtype=jnp.float32)
    out = jax.block_until_ready(channel_attention(x, w1, w2, hw_tile=256))
    ref = channel_attention_ref(x, w1, w2)
    assert out.shape == (N, C, 1, 1)
    assert jnp.allclose(out, ref, atol=1e-5, rtol=1e-5)

    # Case 2: ragged HW (20*20 = 400, chunks of 256, tail of 144 which is also
    # not a multiple of 128) -> exercises the pl.when-gated last-chunk masking.
    x2 = jax.random.normal(k_x2, (N, C, 20, 20), dtype=jnp.float32)
    out2 = jax.block_until_ready(channel_attention(x2, w1, w2, hw_tile=256))
    ref2 = channel_attention_ref(x2, w1, w2)
    assert jnp.allclose(out2, ref2, atol=1e-5, rtol=1e-5)

    # Case 3: default auto-chosen tile (single full-extent chunk at this size).
    out3 = jax.block_until_ready(channel_attention(x, w1, w2))
    assert jnp.allclose(out3, ref, atol=1e-5, rtol=1e-5)

    print("KERNEL_OK")
</pallas_src>

<mosaic_0001>
module attributes {stable_mosaic.version = 11 : i64} {
  func.func @_channel_attention_kernel(%arg0: i32, %arg1: i32, %arg2: memref<1x32x256xf32, #tpu.memory_space<vmem>>, %arg3: memref<2x32xf32, #tpu.memory_space<vmem>>, %arg4: memref<32x2xf32, #tpu.memory_space<vmem>>, %arg5: memref<1x32x1xf32, #tpu.memory_space<vmem>>, %arg6: memref<32x1xf32, #tpu.memory_space<vmem>>, %arg7: memref<32x1xf32, #tpu.memory_space<vmem>>) attributes {dimension_semantics = [#tpu.dimension_semantics<parallel>, #tpu.dimension_semantics<arbitrary>], iteration_bounds = array<i64: 2, 4>, scalar_prefetch = 0 : i64, scratch_operands = 2 : i64, tpu.core_type = #tpu.core_type<tc>, window_params = [{transform_indices = @transform_0, window_bounds = array<i64: 1, 32, 256>}, {pipeline_mode = #tpu.pipeline_mode<synchronous>, transform_indices = @transform_1, window_bounds = array<i64: 2, 32>}, {pipeline_mode = #tpu.pipeline_mode<synchronous>, transform_indices = @transform_2, window_bounds = array<i64: 32, 2>}, {transform_indices = @transform_3, window_bounds = array<i64: 1, 32, 1>}]} {
    %c0_i32 = arith.constant 0 : i32
    %0 = arith.cmpi eq, %arg1, %c0_i32 : i32
    %1 = arith.extui %0 : i1 to i32
    %c0_i32_0 = arith.constant 0 : i32
    %2 = arith.cmpi ne, %1, %c0_i32_0 : i32
    scf.if %2 {
      %cst_13 = arith.constant 0.000000e+00 : f32
      %18 = vector.broadcast %cst_13 : f32 to vector<32x1xf32>
      %c0_14 = arith.constant 0 : index
      %c0_15 = arith.constant 0 : index
      %19 = vector.load %arg6[%c0_14, %c0_15] : memref<32x1xf32, #tpu.memory_space<vmem>>, vector<32x1xf32>
      tpu.vector_store %arg6[%c0_14, %c0_15], %18 {strides = array<i32>} : memref<32x1xf32, #tpu.memory_space<vmem>>, vector<32x1xf32>,
      %cst_16 = arith.constant 0xFF800000 : f32
      %20 = vector.broadcast %cst_16 : f32 to vector<32x1xf32>
      %c0_17 = arith.constant 0 : index
      %c0_18 = arith.constant 0 : index
      %21 = vector.load %arg7[%c0_17, %c0_18] : memref<32x1xf32, #tpu.memory_space<vmem>>, vector<32x1xf32>
      tpu.vector_store %arg7[%c0_17, %c0_18], %20 {strides = array<i32>} : memref<32x1xf32, #tpu.memory_space<vmem>>, vector<32x1xf32>,
    } else {
    }
    %c0 = arith.constant 0 : index
    %c0_1 = arith.constant 0 : index
    %c0_2 = arith.constant 0 : index
    %3 = vector.load %arg2[%c0, %c0_1, %c0_2] : memref<1x32x256xf32, #tpu.memory_space<vmem>>, vector<1x32x256xf32>
    %4 = vector.shape_cast %3 : vector<1x32x256xf32> to vector<32x256xf32>
    %c0_3 = arith.constant 0 : index
    %c0_4 = arith.constant 0 : index
    %5 = vector.load %arg6[%c0_3, %c0_4] : memref<32x1xf32, #tpu.memory_space<vmem>>, vector<32x1xf32>
    %cst = arith.constant dense<0.000000e+00> : vector<32xf32>
    %6 = vector.multi_reduction <add>, %4, %cst [1] : vector<32x256xf32> to vector<32xf32>
    %7 = vector.shape_cast %6 : vector<32xf32> to vector<32x1xf32>
    %8 = arith.addf %5, %7 : vector<32x1xf32>
    %c0_5 = arith.constant 0 : index
    %c0_6 = arith.constant 0 : index
    %9 = vector.load %arg6[%c0_5, %c0_6] : memref<32x1xf32, #tpu.memory_space<vmem>>, vector<32x1xf32>
    tpu.vector_store %arg6[%c0_5, %c0_6], %8 {strides = array<i32>} : memref<32x1xf32, #tpu.memory_space<vmem>>, vector<32x1xf32>,
    %c0_7 = arith.constant 0 : index
    %c0_8 = arith.constant 0 : index
    %10 = vector.load %arg7[%c0_7, %c0_8] : memref<32x1xf32, #tpu.memory_space<vmem>>, vector<32x1xf32>
    %cst_9 = arith.constant dense<0xFF800000> : vector<32xf32>
    %11 = vector.multi_reduction <maximumf>, %4, %cst_9 [1] : vector<32x256xf32> to vector<32xf32>
    %12 = vector.shape_cast %11 : vector<32xf32> to vector<32x1xf32>
    %13 = arith.maximumf %10, %12 : vector<32x1xf32>
    %c0_10 = arith.constant 0 : index
    %c0_11 = arith.constant 0 : index
    %14 = vector.load %arg7[%c0_10, %c0_11] : memref<32x1xf32, #tpu.memory_space<vmem>>, vector<32x1xf32>
    tpu.vector_store %arg7[%c0_10, %c0_11], %13 {strides = array<i32>} : memref<32x1xf32, #tpu.memory_space<vmem>>, vector<32x1xf32>,
    %c3_i32 = arith.constant 3 : i32
    %15 = arith.cmpi eq, %arg1, %c3_i32 : i32
    %16 = arith.extui %15 : i1 to i32
    %c0_i32_12 = arith.constant 0 : i32
    %17 = arith.cmpi ne, %16, %c0_i32_12 : i32
    scf.if %17 {
      %c0_13 = arith.constant 0 : index
      %c0_14 = arith.constant 0 : index
      %18 = vector.load %arg6[%c0_13, %c0_14] : memref<32x1xf32, #tpu.memory_space<vmem>>, vector<32x1xf32>
      %cst_15 = arith.constant 9.765625E-4 : f32
      %19 = vector.broadcast %cst_15 : f32 to vector<32x1xf32>
      %20 = arith.mulf %18, %19 : vector<32x1xf32>
      %c0_16 = arith.constant 0 : index
      %c0_17 = arith.constant 0 : index
      %21 = vector.load %arg7[%c0_16, %c0_17] : memref<32x1xf32, #tpu.memory_space<vmem>>, vector<32x1xf32>
      %22 = tpu.concatenate %20, %21 in 1 : vector<32x1xf32>, vector<32x1xf32> -> vector<32x2xf32>
      %c0_18 = arith.constant 0 : index
      %c0_19 = arith.constant 0 : index
      %23 = vector.load %arg3[%c0_18, %c0_19] : memref<2x32xf32, #tpu.memory_space<vmem>>, vector<2x32xf32>
      %cst_20 = arith.constant dense<0.000000e+00> : vector<2x2xf32>
      %24 = tpu.matmul %23, %22, %cst_20 {dimension_numbers = #tpu.dot_dimension_numbers<[1], [0], [0], [1], [0, 0, 1, 1], [], []>} : vector<2x32xf32>, vector<32x2xf32>, vector<2x2xf32> -> vector<2x2xf32>
      %cst_21 = arith.constant 0.000000e+00 : f32
      %25 = vector.broadcast %cst_21 : f32 to vector<2x2xf32>
      %26 = arith.maximumf %24, %25 : vector<2x2xf32>
      %c0_22 = arith.constant 0 : index
      %c0_23 = arith.constant 0 : index
      %27 = vector.load %arg4[%c0_22, %c0_23] : memref<32x2xf32, #tpu.memory_space<vmem>>, vector<32x2xf32>
      %cst_24 = arith.constant dense<0.000000e+00> : vector<32x2xf32>
      %28 = tpu.matmul %27, %26, %cst_24 {dimension_numbers = #tpu.dot_dimension_numbers<[1], [0], [0], [1], [0, 0, 1, 1], [], []>} : vector<32x2xf32>, vector<2x2xf32>, vector<32x2xf32> -> vector<32x2xf32>
      %29 = vector.extract_strided_slice %28 {offsets = [0, 0], sizes = [32, 1], strides = [1, 1]} : vector<32x2xf32> to vector<32x1xf32>
      %30 = vector.extract_strided_slice %28 {offsets = [0, 1], sizes = [32, 1], strides = [1, 1]} : vector<32x2xf32> to vector<32x1xf32>
      %31 = arith.addf %29, %30 : vector<32x1xf32>
      %32 = arith.negf %31 : vector<32x1xf32>
      %33 = math.exp %32 : vector<32x1xf32>
      %cst_25 = arith.constant 1.000000e+00 : f32
      %34 = vector.broadcast %cst_25 : f32 to vector<32x1xf32>
      %35 = arith.addf %34, %33 : vector<32x1xf32>
      %36 = arith.divf %34, %35 : vector<32x1xf32>
      %37 = vector.shape_cast %36 : vector<32x1xf32> to vector<1x32x1xf32>
      %c0_26 = arith.constant 0 : index
      %c0_27 = arith.constant 0 : index
      %c0_28 = arith.constant 0 : index
      %38 = vector.load %arg5[%c0_26, %c0_27, %c0_28] : memref<1x32x1xf32, #tpu.memory_space<vmem>>, vector<1x32x1xf32>
      tpu.vector_store %arg5[%c0_26, %c0_27, %c0_28], %37 {strides = array<i32>} : memref<1x32x1xf32, #tpu.memory_space<vmem>>, vector<1x32x1xf32>,
    } else {
    }
    return
  }
  func.func @transform_0(%arg0: i32, %arg1: i32) -> (i32, i32, i32) {
    %c0_i32 = arith.constant 0 : i32
    %c0_i32_0 = arith.constant 0 : i32
    return %arg0, %c0_i32, %arg1 : i32, i32, i32
  }
  func.func @transform_1(%arg0: i32, %arg1: i32) -> (i32, i32) {
    %c0_i32 = arith.constant 0 : i32
    %c0_i32_0 = arith.constant 0 : i32
    %c0_i32_1 = arith.constant 0 : i32
    return %c0_i32, %c0_i32_0 : i32, i32
  }
  func.func @transform_2(%arg0: i32, %arg1: i32) -> (i32, i32) {
    %c0_i32 = arith.constant 0 : i32
    %c0_i32_0 = arith.constant 0 : i32
    %c0_i32_1 = arith.constant 0 : i32
    return %c0_i32, %c0_i32_0 : i32, i32
  }
  func.func @transform_3(%arg0: i32, %arg1: i32) -> (i32, i32, i32) {
    %c0_i32 = arith.constant 0 : i32
    %c0_i32_0 = arith.constant 0 : i32
    %c0_i32_1 = arith.constant 0 : i32
    return %arg0, %c0_i32, %c0_i32_0 : i32, i32, i32
  }
}

</mosaic_0001>

<llo_original>
// kernel: tpu_custom_call.1
$region0: #{tpu_custom_call.1}
  #allocation0 [shape = 'u32[]', space=smem, size = 0x4, offset = 0x4, fixed_abs, tag = 'smem constant byte address 0x4 - core index']
  #allocation1 [shape = 'u32[144,128]{1,0:T(1,128)}', space=vmem, size = 0x12000, scoped, tag = 'internal scratch']
  #allocation2 [shape = 'f32[32,1]{1,0:T(8,128)}', space=vmem, size = 0x4000, scoped, tag = 'scratch operand']
  #allocation3 [shape = 'f32[32,1]{1,0:T(8,128)}', space=vmem, size = 0x4000, scoped, tag = 'scratch operand']
  %s0 = inlined_call_operand.hbm [shape: f32[2,32,1024], index: 0, kind: input, shape index: {}]
  %s1 = inlined_call_operand.vmem [shape: f32[2,32], index: 1, kind: input, shape index: {}]
  %s2 = inlined_call_operand.vmem [shape: f32[32,2], index: 2, kind: input, shape index: {}]
  %s3 = inlined_call_operand.vmem [shape: f32[2,32,1], index: 3, kind: output, shape index: {}]
  %s4 = sld [smem:[#allocation0]]
  $region57: #{tpu_custom_call.1} parent=0
    _
  %s6 = ssub.s32 1, %s4
  %s7 = scalar_select 0, %s6, %s4
  $region1: #{tpu_custom_call.1} parent=0
    #allocation4 [shape = 'u8[65536]{0}', space=vmem, size = 0x10000, scoped, tag = 'input window, operand 0']
    #allocation5 [shape = 's32[2]{0}', space=sflag, size = 0x8, scoped, tag = 'scoped memory for tpu_custom_call.1']
    %8 = vsyncpa [#allocation5], 0
    %s9 = scalar_lea.sflag [#allocation5], 1
    %10 = vsyncpa %s9, 0
    loop: start=0, step=1, limit=10
    $region2: #{tpu_custom_call.1} parent=1 // loop_pre_header
      _
    $region3: #{tpu_custom_call.1} parent=1 // loop_header
      %s12 = sphi 0, %s16
      %p13 = scmp.ge.s32.totalorder %s12, 10
      %s19 = sphi 0, %s31
      %s20 = sphi 0, %s27
      %s21 = sphi 0, %s19
      %s22 = sphi 0, %s20
      %s23 = sphi 0, %s21
      %s24 = sphi 0, %s22
      %s36 = sphi 0, %s38
      %s39 = sphi 0, %s36
      %s40 = sphi 0, %s39
      %s56 = sphi 0, %s40
      %s60 = sphi 0, %s60
      %s62 = sphi 0, %s60
      %s63 = sphi 0, %s62
      %s77 = sphi 0, %s63
      %s81 = sphi 0, %s81
      %s83 = sphi 0, %s81
      %s84 = sphi 0, %s83
      %s98 = sphi 0, %s84
      %s104 = sphi 0, %s106
      %s107 = sphi 0, %s104
      %s108 = sphi 0, %s107
      %s124 = sphi 0, %s108
    $region4: #{tpu_custom_call.1} parent=1 // loop_header_branch
      %15 = sbr.rel (%p13) target = $region8
    $region5: #{tpu_custom_call.1} parent=1 // loop_body
      %s17 = ssub.s32 %s12, 1
      %s18 = ssub.s32 %s12, 2
      %s25 = sadd.s32 1, %s20
      %p26 = scmp.ge.s32.totalorder %s25, 4
      %s27 = scalar_select %p26, 0, %s25
      %s28 = sadd.s32 1, %s19
      %s29 = scalar_select %p26, %s28, %s19
      %p30 = scmp.ge.s32.totalorder %s29, 2
      %s31 = scalar_select %p30, 0, %s29
      %s32 = ssub.s32 %s19, %s31
      %s33 = ssub.s32 %s20, %s27
      %s34 = sor.u32 %s32, %s33
      %p35 = scmp.eq.s32.totalorder %s34, 0
      %s37 = sadd.s32 %s36, 1
      %s38 = scalar_select %p35, %s36, %s37
      %p41 = pneg %p35
      %p42 = scmp.eq.s32.totalorder %s12, 7
      %p43 = por %p41, %p42
      %p44 = scmp.ne.s32.totalorder %s36, %s39
      %p45 = scmp.eq.s32.totalorder %s12, 0
      %p46 = por %p44, %p45
      %p47 = scmp.ne.s32.totalorder %s36, %s39
      %p48 = scmp.eq.s32.totalorder %s17, 7
      %p49 = por %p47, %p48
      %p50 = scmp.ne.s32.totalorder %s39, %s40
      %p51 = scmp.eq.s32.totalorder %s17, 0
      %p52 = por %p50, %p51
      %p53 = scmp.ne.s32.totalorder %s39, %s40
      %p54 = scmp.eq.s32.totalorder %s18, 7
      %p55 = por %p53, %p54
      %p57 = scmp.ne.s32.totalorder %s40, %s56
      %p58 = scmp.eq.s32.totalorder %s18, 0
      %p59 = por %p57, %p58
      %s61 = sadd.s32 %s60, 1
      %p64 = scmp.eq.s32.totalorder %s12, 7
      %p65 = scmp.ne.s32.totalorder %s60, %s62
      %p66 = scmp.eq.s32.totalorder %s12, 0
      %p67 = por %p65, %p66
      %p68 = scmp.ne.s32.totalorder %s60, %s62
      %p69 = scmp.eq.s32.totalorder %s17, 7
      %p70 = por %p68, %p69
      %p71 = scmp.ne.s32.totalorder %s62, %s63
      %p72 = scmp.eq.s32.totalorder %s17, 0
      %p73 = por %p71, %p72
      %p74 = scmp.ne.s32.totalorder %s62, %s63
      %p75 = scmp.eq.s32.totalorder %s18, 7
      %p76 = por %p74, %p75
      %p78 = scmp.ne.s32.totalorder %s63, %s77
      %p79 = scmp.eq.s32.totalorder %s18, 0
      %p80 = por %p78, %p79
      %s82 = sadd.s32 %s81, 1
      %p85 = scmp.eq.s32.totalorder %s12, 7
      %p86 = scmp.ne.s32.totalorder %s81, %s83
      %p87 = scmp.eq.s32.totalorder %s12, 0
      %p88 = por %p86, %p87
      %p89 = scmp.ne.s32.totalorder %s81, %s83
      %p90 = scmp.eq.s32.totalorder %s17, 7
      %p91 = por %p89, %p90
      %p92 = scmp.ne.s32.totalorder %s83, %s84
      %p93 = scmp.eq.s32.totalorder %s17, 0
      %p94 = por %p92, %p93
      %p95 = scmp.ne.s32.totalorder %s83, %s84
      %p96 = scmp.eq.s32.totalorder %s18, 7
      %p97 = por %p95, %p96
      %p99 = scmp.ne.s32.totalorder %s84, %s98
      %p100 = scmp.eq.s32.totalorder %s18, 0
      %p101 = por %p99, %p100
      %s102 = ssub.s32 %s19, %s31
      %p103 = scmp.eq.s32.totalorder %s102, 0
      %s105 = sadd.s32 %s104, 1
      %s106 = scalar_select %p103, %s104, %s105
      %p109 = pneg %p103
      %p110 = scmp.eq.s32.totalorder %s12, 7
      %p111 = por %p109, %p110
      %p112 = scmp.ne.s32.totalorder %s104, %s107
      %p113 = scmp.eq.s32.totalorder %s12, 0
      %p114 = por %p112, %p113
      %p115 = scmp.ne.s32.totalorder %s104, %s107
      %p116 = scmp.eq.s32.totalorder %s17, 7
      %p117 = por %p115, %p116
      %p118 = scmp.ne.s32.totalorder %s107, %s108
      %p119 = scmp.eq.s32.totalorder %s17, 0
      %p120 = por %p118, %p119
      %p121 = scmp.ne.s32.totalorder %s107, %s108
      %p122 = scmp.eq.s32.totalorder %s18, 7
      %p123 = por %p121, %p122
      %p125 = scmp.ne.s32.totalorder %s108, %s124
      %p126 = scmp.eq.s32.totalorder %s18, 0
      %p127 = por %p125, %p126
      %p128 = scmp.le.s32.totalorder 1, %s12
      %p129 = scmp.lt.s32.totalorder %s12, 9
      %p130 = pnand %p128, %p129
      %p131 = pneg %p130
      // Predicated region
      $region9: #{tpu_custom_call.1} parent=5 // pred_check
        _
      $region10: #{tpu_custom_call.1} parent=5 // pred_check_branch
        %133 = sbr.rel (%p130) target = $region12
      $region11: #{tpu_custom_call.1} parent=5 // pred_region
        %s134 = ssub.s32 %s12, 1
        // Predicated region
        $region13: #{tpu_custom_call.1} parent=11 // pred_check
          %p135 = pneg %p73
        $region14: #{tpu_custom_call.1} parent=11 // pred_check_branch
          %137 = sbr.rel (%p135) target = $region16
        $region15: #{tpu_custom_call.1} parent=11 // pred_region
          _
        $region16: #{tpu_custom_call.1} parent=11 // pred_fallthru
          _
        // Predicated region
        $region17: #{tpu_custom_call.1} parent=11 // pred_check
          %p138 = pneg %p94
        $region18: #{tpu_custom_call.1} parent=11 // pred_check_branch
          %140 = sbr.rel (%p138) target = $region20
        $region19: #{tpu_custom_call.1} parent=11 // pred_region
          _
        $region20: #{tpu_custom_call.1} parent=11 // pred_fallthru
          _
      $region12: #{tpu_custom_call.1} parent=5 // pred_fallthru
        _
      %p141 = scmp.lt.s32.totalorder %s12, 8
      // Predicated region
      $region21: #{tpu_custom_call.1} parent=5 // pred_check
        %p142 = pneg %p141
      $region22: #{tpu_custom_call.1} parent=5 // pred_check_branch
        %144 = sbr.rel (%p142) target = $region24
      $region23: #{tpu_custom_call.1} parent=5 // pred_region
        // Predicated region
        $region25: #{tpu_custom_call.1} parent=23 // pred_check
          %p145 = pneg %p46
        $region26: #{tpu_custom_call.1} parent=23 // pred_check_branch
          %147 = sbr.rel (%p145) target = $region28
        $region27: #{tpu_custom_call.1} parent=23 // pred_region
          %s148 = sand.u32 %s36, 1
          %s149 = scalar_lea.sflag [#allocation5], %s148
          %s150 = sand.u32 %s36, 1
          %s151 = smul.addr %s150, 64
          %s152 = scalar_lea.vmem [#allocation4], %s151
          %s153 = smul.u32 2, %s20
          %s155 = ssub.s32 1024, 1024
          %156 = vsyncadd %s149, %s155
          %s157 = smul.addr %s19, 32
          %s158 = sadd.s32 %s153, %s157
          %s159 = smul.addr %s158, 128
          %s160 = scalar_lea.hbm %s0, %s159
          %s161 = sshll.u32 %s152, 4
          %s162 = int_to_ptr.vmem [resolvable:$true] %s161
          %167 = dma.hbm_to_vmem [thread:$0]  %s160, 1024, %s162, %s149, 1024, 256, 16
        $region28: #{tpu_custom_call.1} parent=23 // pred_fallthru
          _
      $region24: #{tpu_custom_call.1} parent=5 // pred_fallthru
        _
      %p168 = scmp.le.s32.totalorder 1, %s12
      %p169 = scmp.lt.s32.totalorder %s12, 9
      %p170 = pnand %p168, %p169
      %p171 = pneg %p170
      // Predicated region
      $region29: #{tpu_custom_call.1} parent=5 // pred_check
        _
      $region30: #{tpu_custom_call.1} parent=5 // pred_check_branch
        %173 = sbr.rel (%p170) target = $region32
      $region31: #{tpu_custom_call.1} parent=5 // pred_region
        %s174 = ssub.s32 %s12, 1
        %s175 = sand.u32 %s39, 1
        %s176 = scalar_lea.sflag [#allocation5], %s175
        %s177 = sand.u32 %s39, 1
        %s178 = smul.addr %s177, 64
        %s179 = scalar_lea.vmem [#allocation4], %s178
        // Predicated region
        $region33: #{tpu_custom_call.1} parent=31 // pred_check
          %p180 = pneg %p52
        $region34: #{tpu_custom_call.1} parent=31 // pred_check_branch
          %182 = sbr.rel (%p180) target = $region36
        $region35: #{tpu_custom_call.1} parent=31 // pred_region
          %183 = dma.done %s176, 1024
        $region36: #{tpu_custom_call.1} parent=31 // pred_fallthru
          _
        %s184 = sand.u32 %s39, 1
        %s185 = scalar_lea.sflag [#allocation5], %s184
        %s186 = sand.u32 %s39, 1
        %s187 = smul.addr %s186, 64
        %s188 = scalar_lea.vmem [#allocation4], %s187
        %p189 = pneg %p52
        %p190 = pneg %p49
        %p191 = pneg %p73
        %p192 = pneg %p70
        %p193 = pneg %p94
        %p194 = pneg %p91
        %p195 = pneg %p120
        %p196 = pneg %p117
        %p197 = scmp.lt.s32.totalorder %s21, 1
        %s198 = scalar_select %p197, %s21, 1
        %s199 = smul.addr %s198, 4
        %s200 = smul.addr %s199, 8
        %s201 = scalar_lea.vmem %s3, %s200
        %s202 = smul.u32 2, %s22
        %p203 = scmp.lt.s32.totalorder %s21, 1
        %s204 = scalar_select %p203, %s21, 1
        %s205 = smul.addr %s204, 4
        %s206 = smul.addr %s205, 8
        %s207 = scalar_lea.vmem %s3, %s206
        %p208 = scmp.eq.s32.totalorder %s22, 0
        // Predicated region
        $region37: #{tpu_custom_call.1} parent=31 // pred_check
          %p209 = pneg %p208
        $region38: #{tpu_custom_call.1} parent=31 // pred_check_branch
          %211 = sbr.rel (%p209) target = $region40
        $region39: #{tpu_custom_call.1} parent=31 // pred_region
          %vm212 = vcmask 7168
          %213 = vst.msk [vmem:[#allocation2] sm:$0xff] %vm212, 0.0
          %214 = vst.msk [vmem:[#allocation2 + $0x8] sm:$0xff] %vm212, 0.0
          %215 = vst.msk [vmem:[#allocation2 + $0x10] sm:$0xff] %vm212, 0.0
          %216 = vst.msk [vmem:[#allocation2 + $0x18] sm:$0xff] %vm212, 0.0
          %217 = vst.msk [vmem:[#allocation3] sm:$0xff] %vm212, -inf
          %218 = vst.msk [vmem:[#allocation3 + $0x8] sm:$0xff] %vm212, -inf
          %219 = vst.msk [vmem:[#allocation3 + $0x10] sm:$0xff] %vm212, -inf
          %220 = vst.msk [vmem:[#allocation3 + $0x18] sm:$0xff] %vm212, -inf
        $region40: #{tpu_custom_call.1} parent=31 // pred_fallthru
          _
        %v221 = vld [vmem:[%s179] sm:$0xff]
        %v222 = vld [vmem:[%s179 + $0x8] sm:$0xff]
        %v223 = vld [vmem:[%s179 + $0x10] sm:$0xff]
        %v224 = vld [vmem:[%s179 + $0x18] sm:$0xff]
        %v225 = vld [vmem:[%s179 + $0x20] sm:$0xff]
        %v226 = vld [vmem:[%s179 + $0x28] sm:$0xff]
        %v227 = vld [vmem:[%s179 + $0x30] sm:$0xff]
        %v228 = vld [vmem:[%s179 + $0x38] sm:$0xff]
        %v229 = vld [vmem:[#allocation2] sm:$0xff]
        %v230 = vld [vmem:[#allocation2 + $0x8] sm:$0xff]
        %v231 = vld [vmem:[#allocation2 + $0x10] sm:$0xff]
        %v232 = vld [vmem:[#allocation2 + $0x18] sm:$0xff]
        %v233 = vadd.f32 %v221, %v222
        %234 = vadd.xlane.f32.xlu0 %v233
        %v235 = vpop.xlane.xlu0 %234
        %v236 = vadd.f32 %v223, %v224
        %237 = vadd.xlane.f32.xlu0 %v236
        %v238 = vpop.xlane.xlu0 %237
        %v239 = vadd.f32 %v225, %v226
        %240 = vadd.xlane.f32.xlu0 %v239
        %v241 = vpop.xlane.xlu0 %240
        %v242 = vadd.f32 %v227, %v228
        %243 = vadd.xlane.f32.xlu0 %v242
        %v244 = vpop.xlane.xlu0 %243
        %v245 = vadd.f32 %v229, %v235
        %v246 = vadd.f32 %v230, %v238
        %v247 = vadd.f32 %v231, %v241
        %v248 = vadd.f32 %v232, %v244
        %vm249 = vcmask 7168
        %250 = vst.msk [vmem:[#allocation2] sm:$0xff] %vm249, %v245
        %251 = vst.msk [vmem:[#allocation2 + $0x8] sm:$0xff] %vm249, %v246
        %252 = vst.msk [vmem:[#allocation2 + $0x10] sm:$0xff] %vm249, %v247
        %253 = vst.msk [vmem:[#allocation2 + $0x18] sm:$0xff] %vm249, %v248
        %v254 = vld [vmem:[#allocation3] sm:$0xff]
        %v255 = vld [vmem:[#allocation3 + $0x8] sm:$0xff]
        %v256 = vld [vmem:[#allocation3 + $0x10] sm:$0xff]
        %v257 = vld [vmem:[#allocation3 + $0x18] sm:$0xff]
        %v258 = vmax.f32 %v221, %v222
        %259 = vmax.xlane.f32.xlu0 %v258
        %v260 = vpop.xlane.xlu0 %259
        %v261 = vmax.f32 %v223, %v224
        %262 = vmax.xlane.f32.xlu0 %v261
        %v263 = vpop.xlane.xlu0 %262
        %v264 = vmax.f32 %v225, %v226
        %265 = vmax.xlane.f32.xlu0 %v264
        %v266 = vpop.xlane.xlu0 %265
        %v267 = vmax.f32 %v227, %v228
        %268 = vmax.xlane.f32.xlu0 %v267
        %v269 = vpop.xlane.xlu0 %268
        %v270 = vmax.f32 %v254, %v260
        %v271 = vmax.f32 %v255, %v263
        %v272 = vmax.f32 %v256, %v266
        %v273 = vmax.f32 %v257, %v269
        %274 = vst.msk [vmem:[#allocation3] sm:$0xff] %vm249, %v270
        %275 = vst.msk [vmem:[#allocation3 + $0x8] sm:$0xff] %vm249, %v271
        %276 = vst.msk [vmem:[#allocation3 + $0x10] sm:$0xff] %vm249, %v272
        %277 = vst.msk [vmem:[#allocation3 + $0x18] sm:$0xff] %vm249, %v273
        %p278 = scmp.eq.s32.totalorder %s22, 3
        // Predicated region
        $region41: #{tpu_custom_call.1} parent=31 // pred_check
          %p279 = pneg %p278
        $region42: #{tpu_custom_call.1} parent=31 // pred_check_branch
          %281 = sbr.rel (%p279) target = $region44
        $region43: #{tpu_custom_call.1} parent=31 // pred_region
          %v282 = vld [vmem:[#allocation2] sm:$0xff]
          %v283 = vld [vmem:[#allocation2 + $0x8] sm:$0xff]
          %v284 = vld [vmem:[#allocation2 + $0x10] sm:$0xff]
          %v285 = vld [vmem:[#allocation2 + $0x18] sm:$0xff]
          %v286 = vmul.f32 %v282, 0.0009765625
          %v287 = vmul.f32 %v283, 0.0009765625
          %v288 = vmul.f32 %v284, 0.0009765625
          %v289 = vmul.f32 %v285, 0.0009765625
          %v290 = vld [vmem:[#allocation3] sm:$0xff]
          %v291 = vld [vmem:[#allocation3 + $0x8] sm:$0xff]
          %v292 = vld [vmem:[#allocation3 + $0x10] sm:$0xff]
          %v293 = vld [vmem:[#allocation3 + $0x18] sm:$0xff]
          %298 = vrot.lane.b32.xlu0 %v290, 1
          %v299 = vpop.permute.xlu0 %298
          %300 = vrot.lane.b32.xlu0 %v291, 1
          %v301 = vpop.permute.xlu0 %300
          %302 = vrot.lane.b32.xlu0 %v292, 1
          %v303 = vpop.permute.xlu0 %302
          %304 = vrot.lane.b32.xlu0 %v293, 1
          %v305 = vpop.permute.xlu0 %304
          %v310 = vsel %vm249, %v286, %v299
          %v311 = vsel %vm249, %v287, %v301
          %v312 = vsel %vm249, %v288, %v303
          %v313 = vsel %vm249, %v289, %v305
          %v314 = vld [vmem:[%s1] sm:$0x3]
          %vm315 = vcmask 261120
          %v317 = vsel %vm315, %v314, 0
          %319 = vmatprep.subr.mxu0 0.0
          %320 = vmatpush1.msra.mxu0 %v310
          %321 = vmatprep.subr.mxu0 0.0
          %322 = vmatpush1.msra.mxu0 %v311
          %323 = vmatprep.subr.mxu0 0.0
          %324 = vmatpush1.msra.mxu0 %v312
          %325 = vmatprep.subr.mxu0 0.0
          %326 = vmatpush1.msra.mxu0 %v313
          %327 = vmatprep.subr.mxu0 0.0
          %328 = vmatpush1.msra.mxu0 0.0
          %329 = vmatprep.subr.mxu0 0.0
          %330 = vmatpush1.msra.mxu0 0.0
          %331 = vmatprep.subr.mxu0 0.0
          %332 = vmatpush1.msra.mxu0 0.0
          %333 = vmatprep.subr.mxu0 0.0
          %334 = vmatpush1.msra.mxu0 0.0
          %335 = vmatprep.subr.mxu0 0.0
          %336 = vmatpush1.msra.mxu0 0.0
          %337 = vmatprep.subr.mxu0 0.0
          %338 = vmatpush1.msra.mxu0 0.0
          %339 = vmatprep.subr.mxu0 0.0
          %340 = vmatpush1.msra.mxu0 0.0
          %341 = vmatprep.subr.mxu0 0.0
          %342 = vmatpush1.msra.mxu0 0.0
          %343 = vmatprep.subr.mxu0 0.0
          %344 = vmatpush1.msra.mxu0 0.0
          %345 = vmatprep.subr.mxu0 0.0
          %346 = vmatpush1.msra.mxu0 0.0
          %347 = vmatprep.subr.mxu0 0.0
          %348 = vmatpush1.msra.mxu0 0.0
          %349 = vmatprep.subr.mxu0 0.0
          %350 = vmatpush1.msra.mxu0 0.0
          %351 = vmatprep.subr.mxu0 0.0
          %352 = vmatpush1.msra.mxu0 0.0
          %353 = vmatprep.subr.mxu0 0.0
          %354 = vmatpush1.msra.mxu0 0.0
          %355 = vmatprep.subr.mxu0 0.0
          %356 = vmatpush1.msra.mxu0 0.0
          %357 = vmatprep.subr.mxu0 0.0
          %358 = vmatpush1.msra.mxu0 0.0
          %359 = vmatprep.subr.mxu0 0.0
          %360 = vmatpush1.msra.mxu0 0.0
          %361 = vmatprep.subr.mxu0 0.0
          %362 = vmatpush1.msra.mxu0 0.0
          %363 = vmatprep.subr.mxu0 0.0
          %364 = vmatpush1.msra.mxu0 0.0
          %365 = vmatprep.subr.mxu0 0.0
          %366 = vmatpush1.msra.mxu0 0.0
          %367 = vmatprep.subr.mxu0 0.0
          %368 = vmatpush1.msra.mxu0 0.0
          %369 = vmatprep.subr.mxu0 0.0
          %370 = vmatpush1.msra.mxu0 0.0
          %371 = vmatprep.subr.mxu0 0.0
          %372 = vmatpush1.msra.mxu0 0.0
          %373 = vmatprep.subr.mxu0 0.0
          %374 = vmatpush1.msra.mxu0 0.0
          %375 = vmatprep.subr.mxu0 0.0
          %376 = vmatpush1.msra.mxu0 0.0
          %377 = vmatprep.subr.mxu0 0.0
          %378 = vmatpush1.msra.mxu0 0.0
          %379 = vmatprep.subr.mxu0 0.0
          %380 = vmatpush1.msra.mxu0 0.0
          %381 = vmatprep.subr.mxu0 0.0
          %382 = vmatpush1.msra.mxu0 0.0
          %383 = vmatprep.mubr.f32.mxu0 0.0
          %384 = vmatmul.mubr.f32.gmra.mrb[0].mxu0 %v317
          %v385 = vpop.f32.mrb[0].mxu0
          %v386 = vadd.f32 0.0, %v385
          %v387 = vpop.f32.mrb[0].mxu0
          %388 = vdwg.mxu0
          %v389 = vmax.f32 %v386, 0.0
          %v390 = vld [vmem:[%s2] sm:$0xff]
          %v391 = vld [vmem:[%s2 + $0x8] sm:$0xff]
          %v392 = vld [vmem:[%s2 + $0x10] sm:$0xff]
          %v393 = vld [vmem:[%s2 + $0x18] sm:$0xff]
          %vm394 = vcmask 15360
          %v396 = vsel %vm394, %v390, 0
          %v399 = vsel %vm394, %v391, 0
          %v402 = vsel %vm394, %v392, 0
          %v405 = vsel %vm394, %v393, 0
          %vm407 = vcmask 1041408
          %v409 = vsel %vm407, %v389, 0
          %411 = vmatprep.subr.mxu0 0.0
          %412 = vmatpush1.msra.mxu0 %v409
          %413 = vmatprep.subr.mxu0 0.0
          %414 = vmatpush1.msra.mxu0 0.0
          %415 = vmatprep.subr.mxu0 0.0
          %416 = vmatpush1.msra.mxu0 0.0
          %417 = vmatprep.subr.mxu0 0.0
          %418 = vmatpush1.msra.mxu0 0.0
          %419 = vmatprep.subr.mxu0 0.0
          %420 = vmatpush1.msra.mxu0 0.0
          %421 = vmatprep.subr.mxu0 0.0
          %422 = vmatpush1.msra.mxu0 0.0
          %423 = vmatprep.subr.mxu0 0.0
          %424 = vmatpush1.msra.mxu0 0.0
          %425 = vmatprep.subr.mxu0 0.0
          %426 = vmatpush1.msra.mxu0 0.0
          %427 = vmatprep.subr.mxu0 0.0
          %428 = vmatpush1.msra.mxu0 0.0
          %429 = vmatprep.subr.mxu0 0.0
          %430 = vmatpush1.msra.mxu0 0.0
          %431 = vmatprep.subr.mxu0 0.0
          %432 = vmatpush1.msra.mxu0 0.0
          %433 = vmatprep.subr.mxu0 0.0
          %434 = vmatpush1.msra.mxu0 0.0
          %435 = vmatprep.subr.mxu0 0.0
          %436 = vmatpush1.msra.mxu0 0.0
          %437 = vmatprep.subr.mxu0 0.0
          %438 = vmatpush1.msra.mxu0 0.0
          %439 = vmatprep.subr.mxu0 0.0
          %440 = vmatpush1.msra.mxu0 0.0
          %441 = vmatprep.subr.mxu0 0.0
          %442 = vmatpush1.msra.mxu0 0.0
          %443 = vmatprep.subr.mxu0 0.0
          %444 = vmatpush1.msra.mxu0 0.0
          %445 = vmatprep.subr.mxu0 0.0
          %446 = vmatpush1.msra.mxu0 0.0
          %447 = vmatprep.subr.mxu0 0.0
          %448 = vmatpush1.msra.mxu0 0.0
          %449 = vmatprep.subr.mxu0 0.0
          %450 = vmatpush1.msra.mxu0 0.0
          %451 = vmatprep.subr.mxu0 0.0
          %452 = vmatpush1.msra.mxu0 0.0
          %453 = vmatprep.subr.mxu0 0.0
          %454 = vmatpush1.msra.mxu0 0.0
          %455 = vmatprep.subr.mxu0 0.0
          %456 = vmatpush1.msra.mxu0 0.0
          %457 = vmatprep.subr.mxu0 0.0
          %458 = vmatpush1.msra.mxu0 0.0
          %459 = vmatprep.subr.mxu0 0.0
          %460 = vmatpush1.msra.mxu0 0.0
          %461 = vmatprep.subr.mxu0 0.0
          %462 = vmatpush1.msra.mxu0 0.0
          %463 = vmatprep.subr.mxu0 0.0
          %464 = vmatpush1.msra.mxu0 0.0
          %465 = vmatprep.subr.mxu0 0.0
          %466 = vmatpush1.msra.mxu0 0.0
          %467 = vmatprep.subr.mxu0 0.0
          %468 = vmatpush1.msra.mxu0 0.0
          %469 = vmatprep.subr.mxu0 0.0
          %470 = vmatpush1.msra.mxu0 0.0
          %471 = vmatprep.subr.mxu0 0.0
          %472 = vmatpush1.msra.mxu0 0.0
          %473 = vmatprep.subr.mxu0 0.0
          %474 = vmatpush1.msra.mxu0 0.0
          %475 = vmatprep.mubr.f32.mxu0 0.0
          %476 = vmatmul.mubr.f32.gmra.mrb[0].mxu0 %v396
          %v477 = vpop.f32.mrb[0].mxu0
          %v478 = vadd.f32 0.0, %v477
          %v479 = vpop.f32.mrb[0].mxu0
          %480 = vmatprep.mubr.f32.mxu0 0.0
          %481 = vmatmul.mubr.f32.gmra.mrb[0].mxu0 %v399
          %v482 = vpop.f32.mrb[0].mxu0
          %v483 = vadd.f32 0.0, %v482
          %v484 = vpop.f32.mrb[0].mxu0
          %485 = vmatprep.mubr.f32.mxu0 0.0
          %486 = vmatmul.mubr.f32.gmra.mrb[0].mxu0 %v402
          %v487 = vpop.f32.mrb[0].mxu0
          %v488 = vadd.f32 0.0, %v487
          %v489 = vpop.f32.mrb[0].mxu0
          %490 = vmatprep.mubr.f32.mxu0 0.0
          %491 = vmatmul.mubr.f32.gmra.mrb[0].mxu0 %v405
          %v492 = vpop.f32.mrb[0].mxu0
          %v493 = vadd.f32 0.0, %v492
          %v494 = vpop.f32.mrb[0].mxu0
          %495 = vdwg.mxu0
          %500 = vrot.lane.b32.xlu0 %v478, 127
          %v501 = vpop.permute.xlu0 %500
          %502 = vrot.lane.b32.xlu0 %v483, 127
          %v503 = vpop.permute.xlu0 %502
          %504 = vrot.lane.b32.xlu0 %v488, 127
          %v505 = vpop.permute.xlu0 %504
          %506 = vrot.lane.b32.xlu0 %v493, 127
          %v507 = vpop.permute.xlu0 %506
          %v512 = vadd.f32 %v478, %v501
          %v513 = vadd.f32 %v483, %v503
          %v514 = vadd.f32 %v488, %v505
          %v515 = vadd.f32 %v493, %v507
          %v516 = vxor.u32 %v512, 2147483648
          %v517 = vxor.u32 %v513, 2147483648
          %v518 = vxor.u32 %v514, 2147483648
          %v519 = vxor.u32 %v515, 2147483648
          %v520 = vmul.f32 %v516, 1.442695
          %v521 = vpow.pop %v520
          %v522 = vmul.f32 %v517, 1.442695
          %v523 = vpow.pop %v522
          %v524 = vmul.f32 %v518, 1.442695
          %v525 = vpow.pop %v524
          %v526 = vmul.f32 %v519, 1.442695
          %v527 = vpow.pop %v526
          %v528 = vadd.f32 %v521, 1.0
          %v529 = vadd.f32 %v523, 1.0
          %v530 = vadd.f32 %v525, 1.0
          %v531 = vadd.f32 %v527, 1.0
          %v532 = vrcp.pop %v528
          %v533 = vmul.f32 1.0, %v532
          %v534 = vrcp.pop %v529
          %v535 = vmul.f32 1.0, %v534
          %v536 = vrcp.pop %v530
          %v537 = vmul.f32 1.0, %v536
          %v538 = vrcp.pop %v531
          %v539 = vmul.f32 1.0, %v538
          %540 = vst.msk [vmem:[%s207] sm:$0xff] %vm249, %v533
          %541 = vst.msk [vmem:[%s207 + $0x8] sm:$0xff] %vm249, %v535
          %542 = vst.msk [vmem:[%s207 + $0x10] sm:$0xff] %vm249, %v537
          %543 = vst.msk [vmem:[%s207 + $0x18] sm:$0xff] %vm249, %v539
        $region44: #{tpu_custom_call.1} parent=31 // pred_fallthru
          _
        %p544 = scmp.lt.s32.totalorder %s21, 1
        %s545 = scalar_select %p544, %s21, 1
        %s546 = smul.addr %s545, 4
        %s547 = smul.addr %s546, 8
        %s548 = scalar_lea.vmem %s3, %s547
        // Predicated region
        $region45: #{tpu_custom_call.1} parent=31 // pred_check
          %p549 = pneg %p117
        $region46: #{tpu_custom_call.1} parent=31 // pred_check_branch
          %551 = sbr.rel (%p549) target = $region48
        $region47: #{tpu_custom_call.1} parent=31 // pred_region
          _
        $region48: #{tpu_custom_call.1} parent=31 // pred_fallthru
          _
      $region32: #{tpu_custom_call.1} parent=5 // pred_fallthru
        _
      %p552 = scmp.le.s32.totalorder 2, %s12
      // Predicated region
      $region49: #{tpu_custom_call.1} parent=5 // pred_check
        %p553 = pneg %p552
      $region50: #{tpu_custom_call.1} parent=5 // pred_check_branch
        %555 = sbr.rel (%p553) target = $region52
      $region51: #{tpu_custom_call.1} parent=5 // pred_region
        %s556 = ssub.s32 %s12, 2
        // Predicated region
        $region53: #{tpu_custom_call.1} parent=51 // pred_check
          %p557 = pneg %p123
        $region54: #{tpu_custom_call.1} parent=51 // pred_check_branch
          %559 = sbr.rel (%p557) target = $region56
        $region55: #{tpu_custom_call.1} parent=51 // pred_region
          %p560 = scmp.lt.s32.totalorder %s23, 1
          %s561 = scalar_select %p560, %s23, 1
          %s562 = smul.addr %s561, 4
          %s563 = smul.addr %s562, 8
          %s564 = scalar_lea.vmem %s3, %s563
        $region56: #{tpu_custom_call.1} parent=51 // pred_fallthru
          _
      $region52: #{tpu_custom_call.1} parent=5 // pred_fallthru
        _
    $region6: #{tpu_custom_call.1} parent=1 // loop_footer
      %s16 = sadd.s32 1, %s12
    $region7: #{tpu_custom_call.1} parent=1 // loop_footer_branch
      %11 = sbr.rel target = $region3
    $region8: #{tpu_custom_call.1} parent=1 // loop_exit
      _
    %565 = vsyncpa [#allocation5], 1
    %s566 = scalar_lea.sflag [#allocation5], 1
    %567 = vsyncpa %s566, 1

</llo_original>
